<compile_context>
chip_gen: v7x
topology: tpu7x:2x2x1
jax: 0.10.0
libtpu: 0.0.40
codegen_flags: <defaults>
</compile_context>

<pallas_src>
import functools
import math

import numpy as np
import jax
import jax.numpy as jnp
from jax import lax
from jax.experimental import pallas as pl
from jax.experimental.pallas import tpu as pltpu

_KAPPA = 0.804
_B = 0.4
_EX_SLATER = -0.75 * (1.5 / np.pi) ** (2.0 / 3.0)   # Slater exchange prefactor
_TARGET_BLOCK_BYTES = 2 << 20                        # 2 MiB per stream per buffer


def _tpss_constants(rev: bool):
    mu = 0.14 if rev else 0.21951
    c = 2.35204 if rev else 1.59096
    e = 2.1677 if rev else 1.537
    sqrt_e = math.sqrt(2.1677) if rev else math.sqrt(1.537)
    return mu, c, e, sqrt_e


# --------------------------------- kernel -----------------------------------
def _x_tpss_kernel(rs_ref, s2_ref, z_ref, y_ref, out_ref, *, rev, mu, c, e, sqrt_e):
    rs = rs_ref[...]
    s2 = s2_ref[...]
    z = z_ref[...]
    y = y_ref[...]

    # qb
    a = (5.0 / 3.0) * y * (1.0 - z) - 1.0
    qb_den = lax.rsqrt(1.0 + _B * a * (a + 1.0))          # EUP rsqrt (no div+sqrt)
    qb = 0.45 * a * qb_den + (2.0 / 3.0) * s2

    z2 = z * z
    s4 = s2 * s2
    zp = z2 * z if rev else z2                            # static python branch
    one_plus_z2 = 1.0 + z2
    term1 = (10.0 / 81.0 + c * zp / (one_plus_z2 * one_plus_z2)) * s2
    # 146/2025*qb^2 - 73/405*z*sqrt(0.18+0.5*y^2)*qb, sharing one multiply by qb
    term_qb = qb * ((146.0 / 2025.0) * qb
                    - (73.0 / 405.0) * z * jnp.sqrt(0.18 + 0.5 * y * y))
    x_num = (term1
             + term_qb
             + (100.0 / (6561.0 * _KAPPA)) * s4
             + (4.0 * sqrt_e / 45.0) * z2
             + (e * mu) * s4 * s2)

    den = 1.0 + sqrt_e * s2
    den2 = den * den
    kd2 = _KAPPA * den2
    # F * e_slater with x_den, F and e_slater divides fused into ONE divide:
    #   F*e_slater = C * (k*den2 + (1+k)*x_num) / (rs * (k*den2 + x_num))
    numer = kd2 + (1.0 + _KAPPA) * x_num
    denom = rs * (kd2 + x_num)
    out_ref[...] = (_EX_SLATER * numer / denom).astype(out_ref.dtype)


# --------------------------------- wrapper ----------------------------------
def _round_up(x, m):
    return -(-x // m) * m


def _round_down(x, m):
    return (x // m) * m


def _choose_layout(m, target_block_bytes):
    """Pick (cols, n_rows, block_rows, needs_pad) for the flattened size m."""
    def max_rows_for(cols):
        return max(8, _round_down((target_block_bytes // 4) // cols, 8))

    # Preferred: exact, pad-free factorization with lane-dense columns.
    for cols in (1024, 512, 256, 128):
        if m % cols == 0 and (m // cols) % 8 == 0:
            n_rows = m // cols
            br = min(max_rows_for(cols), n_rows)
            while n_rows % br != 0:       # largest multiple of 8 dividing n_rows
                br -= 8
            return cols, n_rows, br, False

    # Fallback: pad to a (rows % 8 == 0, cols = 512) slab.
    cols = 512
    n_rows = _round_up(max(1, -(-m // cols)), 8)
    br = min(max_rows_for(cols), n_rows)
    n_rows = _round_up(n_rows, br)
    return cols, n_rows, br, True


@functools.partial(jax.jit, static_argnames=("rev",))
def x_tpss(rs, s2, z, y, *, rev=False):
    """Elementwise _X_TPSS.forward: returns F * e_slater(rs), same shape as rs."""
    orig_shape = rs.shape
    orig_dtype = rs.dtype
    m = rs.size
    mu, c, e, sqrt_e = _tpss_constants(rev)

    cols, n_rows, br, needs_pad = _choose_layout(m, _TARGET_BLOCK_BYTES)
    padded = n_rows * cols

    def prep(x, pad_val):
        flat = jnp.ravel(x).astype(jnp.float32)
        if needs_pad:
            flat = jnp.pad(flat, (0, padded - m), constant_values=pad_val)
        return flat.reshape(n_rows, cols)

    args = (prep(rs, 1.0),   # safe pad values: padded lanes stay finite
            prep(s2, 0.0),
            prep(z, 0.0),
            prep(y, 0.0))

    spec = pl.BlockSpec((br, cols), lambda i: (i, 0))
    kernel = functools.partial(_x_tpss_kernel, rev=rev, mu=mu, c=c, e=e,
                               sqrt_e=sqrt_e)

    out = pl.pallas_call(
        kernel,
        out_shape=jax.ShapeDtypeStruct((n_rows, cols), jnp.float32),
        grid_spec=pltpu.PrefetchScalarGridSpec(
            num_scalar_prefetch=0,
            grid=(n_rows // br,),
            in_specs=[spec, spec, spec, spec],
            out_specs=spec,
        ),
        compiler_params=pltpu.CompilerParams(
            dimension_semantics=("parallel",),   # independent blocks -> megacore
            vmem_limit_bytes=48 << 20,           # 5 streams x 2 bufs x 2 MiB + slack
        ),
    )(*args)

    if needs_pad:
        out = out.reshape(-1)[:m]
    return out.reshape(orig_shape).astype(orig_dtype)


# ------------------------- pure-JAX reference (spec) -------------------------
def _x_tpss_reference(rs, s2, z, y, rev=False):
    mu, c, e, sqrt_e = _tpss_constants(rev)
    b = 0.4
    a = 5.0 / 3.0 * y * (1.0 - z) - 1.0
    qb_den = 1.0 / jnp.sqrt(1.0 + b * a * (a + 1.0))
    qb = 0.45 * a * qb_den + 2.0 / 3.0 * s2
    kappa = 0.804
    z2 = z ** 2
    s4 = s2 ** 2
    x_num_1 = (10.0 / 81.0 + c * (z2 * z if rev else z2) / (1.0 + z2) ** 2) * s2
    x_num_3 = -73.0 / 405.0 * z * jnp.sqrt(0.18 + 0.5 * y ** 2) * qb
    x_num = (x_num_1 + 146.0 / 2025.0 * qb ** 2 + x_num_3
             + 100.0 / (6561.0 * kappa) * s4
             + 4.0 * sqrt_e / 45.0 * z2 + e * mu * s4 * s2)
    x_den = 1.0 / (1.0 + sqrt_e * s2) ** 2
    x = x_num * x_den
    F = 1.0 + kappa - kappa ** 2 / (kappa + x)
    return F * (-0.75 * (1.5 / np.pi) ** (2.0 / 3.0) / rs)


if __name__ == "__main__":
    key = jax.random.PRNGKey(0)
    k1, k2, k3, k4 = jax.random.split(key, 4)

    # Small shapes consistent with the module: (n_spins, flattened grid points)
    n_spins, n_grid = 2, 2048
    shape = (n_spins, n_grid)
    rs = 0.5 + jax.random.uniform(k1, shape, jnp.float32)   # Wigner-Seitz radius > 0
    s2 = jax.random.uniform(k2, shape, jnp.float32)          # reduced gradient^2 >= 0
    z = jax.random.uniform(k3, shape, jnp.float32)           # tau_W / tau in [0, 1]
    y = z + jax.random.uniform(k4, shape, jnp.float32)       # tau_unif ratio >= z

    for rev in (False, True):   # TPSS and revTPSS parameterizations
        out = jax.block_until_ready(x_tpss(rs, s2, z, y, rev=rev))
        ref = _x_tpss_reference(rs, s2, z, y, rev=rev)
        np.testing.assert_allclose(np.asarray(out), np.asarray(ref),
                                   rtol=5e-5, atol=1e-6)

    print("KERNEL_OK")
</pallas_src>

<mosaic_0001>
module attributes {stable_mosaic.version = 11 : i64} {
  func.func @_x_tpss_kernel(%arg0: i32, %arg1: memref<8x512xf32, #tpu.memory_space<vmem>>, %arg2: memref<8x512xf32, #tpu.memory_space<vmem>>, %arg3: memref<8x512xf32, #tpu.memory_space<vmem>>, %arg4: memref<8x512xf32, #tpu.memory_space<vmem>>, %arg5: memref<8x512xf32, #tpu.memory_space<vmem>>) attributes {dimension_semantics = [#tpu.dimension_semantics<parallel>], iteration_bounds = array<i64: 1>, scalar_prefetch = 0 : i64, scratch_operands = 0 : i64, tpu.core_type = #tpu.core_type<tc>, window_params = [{transform_indices = @transform_0, window_bounds = array<i64: 8, 512>}, {transform_indices = @transform_1, window_bounds = array<i64: 8, 512>}, {transform_indices = @transform_2, window_bounds = array<i64: 8, 512>}, {transform_indices = @transform_3, window_bounds = array<i64: 8, 512>}, {transform_indices = @transform_4, window_bounds = array<i64: 8, 512>}]} {
    %c0 = arith.constant 0 : index
    %c0_0 = arith.constant 0 : index
    %0 = vector.load %arg1[%c0, %c0_0] : memref<8x512xf32, #tpu.memory_space<vmem>>, vector<8x512xf32>
    %c0_1 = arith.constant 0 : index
    %c0_2 = arith.constant 0 : index
    %1 = vector.load %arg2[%c0_1, %c0_2] : memref<8x512xf32, #tpu.memory_space<vmem>>, vector<8x512xf32>
    %c0_3 = arith.constant 0 : index
    %c0_4 = arith.constant 0 : index
    %2 = vector.load %arg3[%c0_3, %c0_4] : memref<8x512xf32, #tpu.memory_space<vmem>>, vector<8x512xf32>
    %c0_5 = arith.constant 0 : index
    %c0_6 = arith.constant 0 : index
    %3 = vector.load %arg4[%c0_5, %c0_6] : memref<8x512xf32, #tpu.memory_space<vmem>>, vector<8x512xf32>
    %cst = arith.constant 1.66666663 : f32
    %4 = vector.broadcast %cst : f32 to vector<8x512xf32>
    %5 = arith.mulf %4, %3 : vector<8x512xf32>
    %cst_7 = arith.constant 1.000000e+00 : f32
    %6 = vector.broadcast %cst_7 : f32 to vector<8x512xf32>
    %7 = arith.subf %6, %2 : vector<8x512xf32>
    %8 = arith.mulf %5, %7 : vector<8x512xf32>
    %cst_8 = arith.constant 1.000000e+00 : f32
    %9 = vector.broadcast %cst_8 : f32 to vector<8x512xf32>
    %10 = arith.subf %8, %9 : vector<8x512xf32>
    %cst_9 = arith.constant 4.000000e-01 : f32
    %11 = vector.broadcast %cst_9 : f32 to vector<8x512xf32>
    %12 = arith.mulf %11, %10 : vector<8x512xf32>
    %cst_10 = arith.constant 1.000000e+00 : f32
    %13 = vector.broadcast %cst_10 : f32 to vector<8x512xf32>
    %14 = arith.addf %10, %13 : vector<8x512xf32>
    %15 = arith.mulf %12, %14 : vector<8x512xf32>
    %cst_11 = arith.constant 1.000000e+00 : f32
    %16 = vector.broadcast %cst_11 : f32 to vector<8x512xf32>
    %17 = arith.addf %16, %15 : vector<8x512xf32>
    %18 = math.rsqrt %17 : vector<8x512xf32>
    %cst_12 = arith.constant 4.500000e-01 : f32
    %19 = vector.broadcast %cst_12 : f32 to vector<8x512xf32>
    %20 = arith.mulf %19, %10 : vector<8x512xf32>
    %21 = arith.mulf %20, %18 : vector<8x512xf32>
    %cst_13 = arith.constant 0.666666686 : f32
    %22 = vector.broadcast %cst_13 : f32 to vector<8x512xf32>
    %23 = arith.mulf %22, %1 : vector<8x512xf32>
    %24 = arith.addf %21, %23 : vector<8x512xf32>
    %25 = arith.mulf %2, %2 : vector<8x512xf32>
    %26 = arith.mulf %1, %1 : vector<8x512xf32>
    %cst_14 = arith.constant 1.000000e+00 : f32
    %27 = vector.broadcast %cst_14 : f32 to vector<8x512xf32>
    %28 = arith.addf %27, %25 : vector<8x512xf32>
    %cst_15 = arith.constant 1.590960e+00 : f32
    %29 = vector.broadcast %cst_15 : f32 to vector<8x512xf32>
    %30 = arith.mulf %29, %25 : vector<8x512xf32>
    %31 = arith.mulf %28, %28 : vector<8x512xf32>
    %32 = arith.divf %30, %31 : vector<8x512xf32>
    %cst_16 = arith.constant 0.123456791 : f32
    %33 = vector.broadcast %cst_16 : f32 to vector<8x512xf32>
    %34 = arith.addf %33, %32 : vector<8x512xf32>
    %35 = arith.mulf %34, %1 : vector<8x512xf32>
    %cst_17 = arith.constant 0.0720987617 : f32
    %36 = vector.broadcast %cst_17 : f32 to vector<8x512xf32>
    %37 = arith.mulf %36, %24 : vector<8x512xf32>
    %cst_18 = arith.constant 0.180246919 : f32
    %38 = vector.broadcast %cst_18 : f32 to vector<8x512xf32>
    %39 = arith.mulf %38, %2 : vector<8x512xf32>
    %cst_19 = arith.constant 5.000000e-01 : f32
    %40 = vector.broadcast %cst_19 : f32 to vector<8x512xf32>
    %41 = arith.mulf %40, %3 : vector<8x512xf32>
    %42 = arith.mulf %41, %3 : vector<8x512xf32>
    %cst_20 = arith.constant 1.800000e-01 : f32
    %43 = vector.broadcast %cst_20 : f32 to vector<8x512xf32>
    %44 = arith.addf %43, %42 : vector<8x512xf32>
    %45 = math.sqrt %44 : vector<8x512xf32>
    %46 = arith.mulf %39, %45 : vector<8x512xf32>
    %47 = arith.subf %37, %46 : vector<8x512xf32>
    %48 = arith.mulf %24, %47 : vector<8x512xf32>
    %49 = arith.addf %35, %48 : vector<8x512xf32>
    %cst_21 = arith.constant 0.0189571884 : f32
    %50 = vector.broadcast %cst_21 : f32 to vector<8x512xf32>
    %51 = arith.mulf %50, %26 : vector<8x512xf32>
    %52 = arith.addf %49, %51 : vector<8x512xf32>
    %cst_22 = arith.constant 0.110200718 : f32
    %53 = vector.broadcast %cst_22 : f32 to vector<8x512xf32>
    %54 = arith.mulf %53, %25 : vector<8x512xf32>
    %55 = arith.addf %52, %54 : vector<8x512xf32>
    %cst_23 = arith.constant 0.337386876 : f32
    %56 = vector.broadcast %cst_23 : f32 to vector<8x512xf32>
    %57 = arith.mulf %56, %26 : vector<8x512xf32>
    %58 = arith.mulf %57, %1 : vector<8x512xf32>
    %59 = arith.addf %55, %58 : vector<8x512xf32>
    %cst_24 = arith.constant 1.23975801 : f32
    %60 = vector.broadcast %cst_24 : f32 to vector<8x512xf32>
    %61 = arith.mulf %60, %1 : vector<8x512xf32>
    %cst_25 = arith.constant 1.000000e+00 : f32
    %62 = vector.broadcast %cst_25 : f32 to vector<8x512xf32>
    %63 = arith.addf %62, %61 : vector<8x512xf32>
    %64 = arith.mulf %63, %63 : vector<8x512xf32>
    %cst_26 = arith.constant 8.040000e-01 : f32
    %65 = vector.broadcast %cst_26 : f32 to vector<8x512xf32>
    %66 = arith.mulf %65, %64 : vector<8x512xf32>
    %cst_27 = arith.constant 1.804000e+00 : f32
    %67 = vector.broadcast %cst_27 : f32 to vector<8x512xf32>
    %68 = arith.mulf %67, %59 : vector<8x512xf32>
    %69 = arith.addf %66, %68 : vector<8x512xf32>
    %70 = arith.addf %66, %59 : vector<8x512xf32>
    %71 = arith.mulf %0, %70 : vector<8x512xf32>
    %cst_28 = arith.constant -0.458165288 : f32
    %72 = vector.broadcast %cst_28 : f32 to vector<8x512xf32>
    %73 = arith.mulf %72, %69 : vector<8x512xf32>
    %74 = arith.divf %73, %71 : vector<8x512xf32>
    %c0_29 = arith.constant 0 : index
    %c0_30 = arith.constant 0 : index
    %75 = vector.load %arg5[%c0_29, %c0_30] : memref<8x512xf32, #tpu.memory_space<vmem>>, vector<8x512xf32>
    tpu.vector_store %arg5[%c0_29, %c0_30], %74 {strides = array<i32>} : memref<8x512xf32, #tpu.memory_space<vmem>>, vector<8x512xf32>,
    return
  }
  func.func @transform_0(%arg0: i32) -> (i32, i32) {
    %c0_i32 = arith.constant 0 : i32
    %c0_i32_0 = arith.constant 0 : i32
    return %arg0, %c0_i32 : i32, i32
  }
  func.func @transform_1(%arg0: i32) -> (i32, i32) {
    %c0_i32 = arith.constant 0 : i32
    %c0_i32_0 = arith.constant 0 : i32
    return %arg0, %c0_i32 : i32, i32
  }
  func.func @transform_2(%arg0: i32) -> (i32, i32) {
    %c0_i32 = arith.constant 0 : i32
    %c0_i32_0 = arith.constant 0 : i32
    return %arg0, %c0_i32 : i32, i32
  }
  func.func @transform_3(%arg0: i32) -> (i32, i32) {
    %c0_i32 = arith.constant 0 : i32
    %c0_i32_0 = arith.constant 0 : i32
    return %arg0, %c0_i32 : i32, i32
  }
  func.func @transform_4(%arg0: i32) -> (i32, i32) {
    %c0_i32 = arith.constant 0 : i32
    %c0_i32_0 = arith.constant 0 : i32
    return %arg0, %c0_i32 : i32, i32
  }
}

</mosaic_0001>

<llo_original>
// kernel: x_tpss.1
$region0: #{x_tpss.1}
  #allocation0 [shape = 'u32[]', space=smem, size = 0x4, offset = 0x4, fixed_abs, tag = 'smem constant byte address 0x4 - core index']
  #allocation1 [shape = 'u32[144,128]{1,0:T(1,128)}', space=vmem, size = 0x12000, scoped, tag = 'internal scratch']
  %s0 = inlined_call_operand.vmem [shape: f32[8,512], index: 0, kind: input, shape index: {}]
  %s1 = inlined_call_operand.vmem [shape: f32[8,512], index: 1, kind: input, shape index: {}]
  %s2 = inlined_call_operand.vmem [shape: f32[8,512], index: 2, kind: input, shape index: {}]
  %s3 = inlined_call_operand.vmem [shape: f32[8,512], index: 3, kind: input, shape index: {}]
  %s4 = inlined_call_operand.vmem [shape: f32[8,512], index: 4, kind: output, shape index: {}]
  %s5 = sld [smem:[#allocation0]]
  $region26: #{x_tpss.1} parent=0
    _
  %s7 = ssub.s32 1, %s5
  %s8 = scalar_select 0, %s7, %s5
  // Predicated region
  $region2: #{x_tpss.1} parent=0 // pred_check
    _
  $region3: #{x_tpss.1} parent=0 // pred_check_branch
    %10 = sbr.rel (0) target = $region5
  $region4: #{x_tpss.1} parent=0 // pred_region
    _
  $region5: #{x_tpss.1} parent=0 // pred_fallthru
    _
  // Predicated region
  $region6: #{x_tpss.1} parent=0 // pred_check
    _
  $region7: #{x_tpss.1} parent=0 // pred_check_branch
    %12 = sbr.rel (0) target = $region9
  $region8: #{x_tpss.1} parent=0 // pred_region
    _
  $region9: #{x_tpss.1} parent=0 // pred_fallthru
    _
  // Predicated region
  $region10: #{x_tpss.1} parent=0 // pred_check
    _
  $region11: #{x_tpss.1} parent=0 // pred_check_branch
    %14 = sbr.rel (0) target = $region13
  $region12: #{x_tpss.1} parent=0 // pred_region
    _
  $region13: #{x_tpss.1} parent=0 // pred_fallthru
    _
  // Predicated region
  $region14: #{x_tpss.1} parent=0 // pred_check
    _
  $region15: #{x_tpss.1} parent=0 // pred_check_branch
    %16 = sbr.rel (0) target = $region17
  $region16: #{x_tpss.1} parent=0 // pred_region
    _
  $region17: #{x_tpss.1} parent=0 // pred_fallthru
    _
  %v17 = vld [vmem:[%s0] sm:$0xff]
  %v18 = vld [vmem:[%s0 + $0x8] sm:$0xff]
  %v19 = vld [vmem:[%s0 + $0x10] sm:$0xff]
  %v20 = vld [vmem:[%s0 + $0x18] sm:$0xff]
  %v21 = vld [vmem:[%s1] sm:$0xff]
  %v22 = vld [vmem:[%s1 + $0x8] sm:$0xff]
  %v23 = vld [vmem:[%s1 + $0x10] sm:$0xff]
  %v24 = vld [vmem:[%s1 + $0x18] sm:$0xff]
  %v25 = vld [vmem:[%s2] sm:$0xff]
  %v26 = vld [vmem:[%s2 + $0x8] sm:$0xff]
  %v27 = vld [vmem:[%s2 + $0x10] sm:$0xff]
  %v28 = vld [vmem:[%s2 + $0x18] sm:$0xff]
  %v29 = vld [vmem:[%s3] sm:$0xff]
  %v30 = vld [vmem:[%s3 + $0x8] sm:$0xff]
  %v31 = vld [vmem:[%s3 + $0x10] sm:$0xff]
  %v32 = vld [vmem:[%s3 + $0x18] sm:$0xff]
  %v33 = vmul.f32 %v29, 1.6666666
  %v34 = vmul.f32 %v30, 1.6666666
  %v35 = vmul.f32 %v31, 1.6666666
  %v36 = vmul.f32 %v32, 1.6666666
  %v37 = vsub.f32 1.0, %v25
  %v38 = vsub.f32 1.0, %v26
  %v39 = vsub.f32 1.0, %v27
  %v40 = vsub.f32 1.0, %v28
  %v41 = vmul.f32 %v33, %v37
  %v42 = vmul.f32 %v34, %v38
  %v43 = vmul.f32 %v35, %v39
  %v44 = vmul.f32 %v36, %v40
  %v45 = vsub.f32 %v41, 1.0
  %v46 = vsub.f32 %v42, 1.0
  %v47 = vsub.f32 %v43, 1.0
  %v48 = vsub.f32 %v44, 1.0
  %v49 = vmul.f32 %v45, 0.4
  %v50 = vmul.f32 %v46, 0.4
  %v51 = vmul.f32 %v47, 0.4
  %v52 = vmul.f32 %v48, 0.4
  %v53 = vadd.f32 %v45, 1.0
  %v54 = vadd.f32 %v46, 1.0
  %v55 = vadd.f32 %v47, 1.0
  %v56 = vadd.f32 %v48, 1.0
  %v57 = vmul.f32 %v49, %v53
  %v58 = vmul.f32 %v50, %v54
  %v59 = vmul.f32 %v51, %v55
  %v60 = vmul.f32 %v52, %v56
  %v61 = vadd.f32 %v57, 1.0
  %v62 = vadd.f32 %v58, 1.0
  %v63 = vadd.f32 %v59, 1.0
  %v64 = vadd.f32 %v60, 1.0
  %v65 = vrsqrt.pop %v61
  %v66 = vrsqrt.pop %v62
  %v67 = vrsqrt.pop %v63
  %v68 = vrsqrt.pop %v64
  %v69 = vmul.f32 %v45, 0.45
  %v70 = vmul.f32 %v46, 0.45
  %v71 = vmul.f32 %v47, 0.45
  %v72 = vmul.f32 %v48, 0.45
  %v73 = vmul.f32 %v69, %v65
  %v74 = vmul.f32 %v70, %v66
  %v75 = vmul.f32 %v71, %v67
  %v76 = vmul.f32 %v72, %v68
  %v77 = vmul.f32 %v21, 0.6666667
  %v78 = vmul.f32 %v22, 0.6666667
  %v79 = vmul.f32 %v23, 0.6666667
  %v80 = vmul.f32 %v24, 0.6666667
  %v81 = vadd.f32 %v73, %v77
  %v82 = vadd.f32 %v74, %v78
  %v83 = vadd.f32 %v75, %v79
  %v84 = vadd.f32 %v76, %v80
  %v85 = vmul.f32 %v25, %v25
  %v86 = vmul.f32 %v26, %v26
  %v87 = vmul.f32 %v27, %v27
  %v88 = vmul.f32 %v28, %v28
  %v89 = vmul.f32 %v21, %v21
  %v90 = vmul.f32 %v22, %v22
  %v91 = vmul.f32 %v23, %v23
  %v92 = vmul.f32 %v24, %v24
  %v93 = vadd.f32 %v85, 1.0
  %v94 = vadd.f32 %v86, 1.0
  %v95 = vadd.f32 %v87, 1.0
  %v96 = vadd.f32 %v88, 1.0
  %v97 = vmul.f32 %v85, 1.59096
  %v98 = vmul.f32 %v86, 1.59096
  %v99 = vmul.f32 %v87, 1.59096
  %v100 = vmul.f32 %v88, 1.59096
  %v101 = vmul.f32 %v93, %v93
  %v102 = vmul.f32 %v94, %v94
  %v103 = vmul.f32 %v95, %v95
  %v104 = vmul.f32 %v96, %v96
  %v105 = vrcp.pop %v101
  %v106 = vmul.f32 %v97, %v105
  %v107 = vrcp.pop %v102
  %v108 = vmul.f32 %v98, %v107
  %v109 = vrcp.pop %v103
  %v110 = vmul.f32 %v99, %v109
  %v111 = vrcp.pop %v104
  %v112 = vmul.f32 %v100, %v111
  %v113 = vadd.f32 %v106, 0.12345679
  %v114 = vadd.f32 %v108, 0.12345679
  %v115 = vadd.f32 %v110, 0.12345679
  %v116 = vadd.f32 %v112, 0.12345679
  %v117 = vmul.f32 %v113, %v21
  %v118 = vmul.f32 %v114, %v22
  %v119 = vmul.f32 %v115, %v23
  %v120 = vmul.f32 %v116, %v24
  %v121 = vmul.f32 %v81, 0.07209876
  %v122 = vmul.f32 %v82, 0.07209876
  %v123 = vmul.f32 %v83, 0.07209876
  %v124 = vmul.f32 %v84, 0.07209876
  %v125 = vmul.f32 %v25, 0.18024692
  %v126 = vmul.f32 %v26, 0.18024692
  %v127 = vmul.f32 %v27, 0.18024692
  %v128 = vmul.f32 %v28, 0.18024692
  %v129 = vmul.f32 %v29, 0.5
  %v130 = vmul.f32 %v30, 0.5
  %v131 = vmul.f32 %v31, 0.5
  %v132 = vmul.f32 %v32, 0.5
  %v133 = vmul.f32 %v129, %v29
  %v134 = vmul.f32 %v130, %v30
  %v135 = vmul.f32 %v131, %v31
  %v136 = vmul.f32 %v132, %v32
  %v137 = vadd.f32 %v133, 0.18
  %v138 = vadd.f32 %v134, 0.18
  %v139 = vadd.f32 %v135, 0.18
  %v140 = vadd.f32 %v136, 0.18
  %v141 = vrsqrt.pop %v137
  %v142 = vmul.f32 %v137, %v141
  %vm143 = vcmp.eq.f32.partialorder %v137, inf
  %v144 = vsel %vm143, %v137, %v142
  %vm145 = vcmp.eq.f32.partialorder %v137, 0.0
  %v146 = vand.u32 %v137, 2147483648
  %v147 = vsel %vm145, %v146, %v144
  %v148 = vrsqrt.pop %v138
  %v149 = vmul.f32 %v138, %v148
  %vm150 = vcmp.eq.f32.partialorder %v138, inf
  %v151 = vsel %vm150, %v138, %v149
  %vm152 = vcmp.eq.f32.partialorder %v138, 0.0
  %v153 = vand.u32 %v138, 2147483648
  %v154 = vsel %vm152, %v153, %v151
  %v155 = vrsqrt.pop %v139
  %v156 = vmul.f32 %v139, %v155
  %vm157 = vcmp.eq.f32.partialorder %v139, inf
  %v158 = vsel %vm157, %v139, %v156
  %vm159 = vcmp.eq.f32.partialorder %v139, 0.0
  %v160 = vand.u32 %v139, 2147483648
  %v161 = vsel %vm159, %v160, %v158
  %v162 = vrsqrt.pop %v140
  %v163 = vmul.f32 %v140, %v162
  %vm164 = vcmp.eq.f32.partialorder %v140, inf
  %v165 = vsel %vm164, %v140, %v163
  %vm166 = vcmp.eq.f32.partialorder %v140, 0.0
  %v167 = vand.u32 %v140, 2147483648
  %v168 = vsel %vm166, %v167, %v165
  %v169 = vmul.f32 %v125, %v147
  %v170 = vmul.f32 %v126, %v154
  %v171 = vmul.f32 %v127, %v161
  %v172 = vmul.f32 %v128, %v168
  %v173 = vsub.f32 %v121, %v169
  %v174 = vsub.f32 %v122, %v170
  %v175 = vsub.f32 %v123, %v171
  %v176 = vsub.f32 %v124, %v172
  %v177 = vmul.f32 %v81, %v173
  %v178 = vmul.f32 %v82, %v174
  %v179 = vmul.f32 %v83, %v175
  %v180 = vmul.f32 %v84, %v176
  %v181 = vadd.f32 %v117, %v177
  %v182 = vadd.f32 %v118, %v178
  %v183 = vadd.f32 %v119, %v179
  %v184 = vadd.f32 %v120, %v180
  %v185 = vmul.f32 %v89, 0.018957188
  %v186 = vmul.f32 %v90, 0.018957188
  %v187 = vmul.f32 %v91, 0.018957188
  %v188 = vmul.f32 %v92, 0.018957188
  %v189 = vadd.f32 %v181, %v185
  %v190 = vadd.f32 %v182, %v186
  %v191 = vadd.f32 %v183, %v187
  %v192 = vadd.f32 %v184, %v188
  %v193 = vmul.f32 %v85, 0.11020072
  %v194 = vmul.f32 %v86, 0.11020072
  %v195 = vmul.f32 %v87, 0.11020072
  %v196 = vmul.f32 %v88, 0.11020072
  %v197 = vadd.f32 %v189, %v193
  %v198 = vadd.f32 %v190, %v194
  %v199 = vadd.f32 %v191, %v195
  %v200 = vadd.f32 %v192, %v196
  %v201 = vmul.f32 %v89, 0.33738688
  %v202 = vmul.f32 %v90, 0.33738688
  %v203 = vmul.f32 %v91, 0.33738688
  %v204 = vmul.f32 %v92, 0.33738688
  %v205 = vmul.f32 %v201, %v21
  %v206 = vmul.f32 %v202, %v22
  %v207 = vmul.f32 %v203, %v23
  %v208 = vmul.f32 %v204, %v24
  %v209 = vadd.f32 %v197, %v205
  %v210 = vadd.f32 %v198, %v206
  %v211 = vadd.f32 %v199, %v207
  %v212 = vadd.f32 %v200, %v208
  %v213 = vmul.f32 %v21, 1.239758
  %v214 = vmul.f32 %v22, 1.239758
  %v215 = vmul.f32 %v23, 1.239758
  %v216 = vmul.f32 %v24, 1.239758
  %v217 = vadd.f32 %v213, 1.0
  %v218 = vadd.f32 %v214, 1.0
  %v219 = vadd.f32 %v215, 1.0
  %v220 = vadd.f32 %v216, 1.0
  %v221 = vmul.f32 %v217, %v217
  %v222 = vmul.f32 %v218, %v218
  %v223 = vmul.f32 %v219, %v219
  %v224 = vmul.f32 %v220, %v220
  %v225 = vmul.f32 %v221, 0.804
  %v226 = vmul.f32 %v222, 0.804
  %v227 = vmul.f32 %v223, 0.804
  %v228 = vmul.f32 %v224, 0.804
  %v229 = vmul.f32 %v209, 1.804
  %v230 = vmul.f32 %v210, 1.804
  %v231 = vmul.f32 %v211, 1.804
  %v232 = vmul.f32 %v212, 1.804
  %v233 = vadd.f32 %v225, %v229
  %v234 = vadd.f32 %v226, %v230
  %v235 = vadd.f32 %v227, %v231
  %v236 = vadd.f32 %v228, %v232
  %v237 = vadd.f32 %v225, %v209
  %v238 = vadd.f32 %v226, %v210
  %v239 = vadd.f32 %v227, %v211
  %v240 = vadd.f32 %v228, %v212
  %v241 = vmul.f32 %v17, %v237
  %v242 = vmul.f32 %v18, %v238
  %v243 = vmul.f32 %v19, %v239
  %v244 = vmul.f32 %v20, %v240
  %v245 = vmul.f32 %v233, -0.4581653
  %v246 = vmul.f32 %v234, -0.4581653
  %v247 = vmul.f32 %v235, -0.4581653
  %v248 = vmul.f32 %v236, -0.4581653
  %v249 = vrcp.pop %v241
  %v250 = vmul.f32 %v245, %v249
  %v251 = vrcp.pop %v242
  %v252 = vmul.f32 %v246, %v251
  %v253 = vrcp.pop %v243
  %v254 = vmul.f32 %v247, %v253
  %v255 = vrcp.pop %v244
  %v256 = vmul.f32 %v248, %v255
  %257 = vst [vmem:[%s4] sm:$0xff] %v250
  %258 = vst [vmem:[%s4 + $0x8] sm:$0xff] %v252
  %259 = vst [vmem:[%s4 + $0x10] sm:$0xff] %v254
  %260 = vst [vmem:[%s4 + $0x18] sm:$0xff] %v256
  // Predicated region
  $region18: #{x_tpss.1} parent=0 // pred_check
    _
  $region19: #{x_tpss.1} parent=0 // pred_check_branch
    %262 = sbr.rel (0) target = $region21
  $region20: #{x_tpss.1} parent=0 // pred_region
    _
  $region21: #{x_tpss.1} parent=0 // pred_fallthru
    _
  // Predicated region
  $region22: #{x_tpss.1} parent=0 // pred_check
    _
  $region23: #{x_tpss.1} parent=0 // pred_check_branch
    %264 = sbr.rel (0) target = $region25
  $region24: #{x_tpss.1} parent=0 // pred_region
    _
  $region25: #{x_tpss.1} parent=0 // pred_fallthru
    _

</llo_original>
